<compile_context>
chip_gen: v7x
topology: tpu7x:2x2x1
jax: 0.10.0
libtpu: 0.0.40
codegen_flags: <defaults>
</compile_context>

<pallas_src>
import jax
import jax.numpy as jnp
from jax.experimental import pallas as pl
from jax.experimental.pallas import tpu as pltpu

ROWS, COLS = 16, 128          # demo field shape (tiny; overhead-bound, see note)

# --- VMEM budgeting (generation-aware, conservative) -------------------------
_STREAMS = 3                  # x, w, y
_BUFFERS = 2                  # default double-buffering; do not deepen
_TILE_BYTES = 6 << 20         # per-stream, per-buffer tile budget (6 MiB)
_VMEM_LIMIT = 48 << 20        # 3 x 2 x 6 MiB = 36 MiB + headroom; < v7x 64 MiB
_SPLIT_BYTES = 4 << 20        # above this, force >=2 row tiles (v7x megacore)


def tin_kernel(x_ref, w_ref, o_ref):
    """Registered Taichi kernel body: out[i,j] = x[i,j] * w[i,j] + 1.0."""
    o_ref[...] = x_ref[...] * w_ref[...] + jnp.asarray(1.0, dtype=o_ref.dtype)


def _lane_dense_shape(total: int):
    """Pick a (rows, cols) slab whose last dim is a large multiple of 128."""
    candidates = (8192, 4096, 2048, 1024, 512, 256, 128)
    for c in candidates:                      # prefer >=8 sublanes of rows
        if total % c == 0 and total // c >= 8:
            return total // c, c
    for c in candidates:                      # otherwise widest exact divisor
        if total % c == 0:
            return total // c, c
    return None                               # ragged total: caller falls back


def empty_tin_forward(x: jax.Array, w: jax.Array) -> jax.Array:
    """EmptyTin.forward(x) with one internal weight field `w` (elementwise)."""
    assert x.shape == w.shape and x.dtype == w.dtype
    orig_shape = x.shape
    total = x.size
    itemsize = jnp.dtype(x.dtype).itemsize

    # ---- lane-dense flattening (elementwise op: layout is free to choose) ----
    slab = _lane_dense_shape(total)
    if slab is not None:
        rows, cols = slab
    else:
        # Ragged element count: keep the trailing dim, ragged blocks handled
        # below by full-extent / cdiv tiling.
        cols = orig_shape[-1] if len(orig_shape) >= 1 else total
        rows = total // cols
    xs = x.reshape(rows, cols)
    ws = w.reshape(rows, cols)

    # ---- VMEM-budget-derived tile selection ----------------------------------
    # Column tile: full width when 8 rows of it fit the per-stream budget,
    # otherwise a multiple of 128 (ragged last column block is fine).
    if cols <= 128 or 8 * cols * itemsize <= _TILE_BYTES:
        tile_cols = cols
    else:
        tile_cols = max(128, ((_TILE_BYTES // (8 * itemsize)) // 128) * 128)

    # Row tile: as many rows as the budget allows, multiple of 8.
    tile_rows = max(8, ((_TILE_BYTES // (tile_cols * itemsize)) // 8) * 8)
    if tile_rows >= rows:
        tile_rows = rows
        # Megacore: big array that fits one tile -> split into 2 row tiles so
        # both v7x TensorCores stream HBM (no-op on v5e/v6e single-TC).
        if rows >= 16 and total * itemsize >= _SPLIT_BYTES:
            tile_rows = max(8, ((pl.cdiv(rows, 2) + 7) // 8) * 8)

    grid = (pl.cdiv(rows, tile_rows), pl.cdiv(cols, tile_cols))
    block = (tile_rows, tile_cols)

    y = pl.pallas_call(
        tin_kernel,
        out_shape=jax.ShapeDtypeStruct((rows, cols), x.dtype),
        grid=grid,
        in_specs=[
            pl.BlockSpec(block, lambda i, j: (i, j)),   # input field
            pl.BlockSpec(block, lambda i, j: (i, j)),   # internal (weight) field
        ],
        out_specs=pl.BlockSpec(block, lambda i, j: (i, j)),  # output field
        compiler_params=pltpu.CompilerParams(
            dimension_semantics=("parallel", "parallel"),
            vmem_limit_bytes=_VMEM_LIMIT,
        ),
        cost_estimate=pl.CostEstimate(
            flops=2 * total,
            bytes_accessed=_STREAMS * total * itemsize,
            transcendentals=0,
        ),
    )(xs, ws)

    return y.reshape(orig_shape)


def reference_forward(x: jnp.ndarray, w: jnp.ndarray) -> jnp.ndarray:
    # Pure-JAX reference for the same registered kernel.
    return x * w + 1.0


if __name__ == "__main__":
    key = jax.random.PRNGKey(0)
    kx, kw = jax.random.split(key)

    # Input tensor fed to the registered input field.
    x = jax.random.normal(kx, (ROWS, COLS), dtype=jnp.float32)
    # Deterministic init of the internal ("weight") field
    # (stannum: register_internal_field(..., value=tensor)).
    w = jax.random.normal(kw, (ROWS, COLS), dtype=jnp.float32)

    y = empty_tin_forward(x, w)
    jax.block_until_ready(y)

    y_ref = reference_forward(x, w)
    assert y.shape == (ROWS, COLS)
    assert jnp.allclose(y, y_ref, atol=1e-6, rtol=1e-6)

    # TODO(synk): EmptyTin's autograd machinery (TinFunc.backward, grad-field
    # clearing) is PyTorch framework glue with no Pallas forward-pass analogue.
    print("KERNEL_OK")
</pallas_src>

<mosaic_0001>
module attributes {stable_mosaic.version = 11 : i64} {
  func.func @tin_kernel(%arg0: i32, %arg1: i32, %arg2: memref<8x256xf32, #tpu.memory_space<vmem>>, %arg3: memref<8x256xf32, #tpu.memory_space<vmem>>, %arg4: memref<8x256xf32, #tpu.memory_space<vmem>>) attributes {dimension_semantics = [#tpu.dimension_semantics<parallel>, #tpu.dimension_semantics<parallel>], iteration_bounds = array<i64: 1, 1>, scalar_prefetch = 0 : i64, scratch_operands = 0 : i64, tpu.core_type = #tpu.core_type<tc>, window_params = [{transform_indices = @transform_0, window_bounds = array<i64: 8, 256>}, {transform_indices = @transform_1, window_bounds = array<i64: 8, 256>}, {transform_indices = @transform_2, window_bounds = array<i64: 8, 256>}]} {
    %c0 = arith.constant 0 : index
    %c0_0 = arith.constant 0 : index
    %0 = vector.load %arg2[%c0, %c0_0] : memref<8x256xf32, #tpu.memory_space<vmem>>, vector<8x256xf32>
    %c0_1 = arith.constant 0 : index
    %c0_2 = arith.constant 0 : index
    %1 = vector.load %arg3[%c0_1, %c0_2] : memref<8x256xf32, #tpu.memory_space<vmem>>, vector<8x256xf32>
    %2 = arith.mulf %0, %1 : vector<8x256xf32>
    %cst = arith.constant 1.000000e+00 : f32
    %3 = vector.broadcast %cst : f32 to vector<8x256xf32>
    %4 = arith.addf %2, %3 : vector<8x256xf32>
    %c0_3 = arith.constant 0 : index
    %c0_4 = arith.constant 0 : index
    %5 = vector.load %arg4[%c0_3, %c0_4] : memref<8x256xf32, #tpu.memory_space<vmem>>, vector<8x256xf32>
    tpu.vector_store %arg4[%c0_3, %c0_4], %4 {strides = array<i32>} : memref<8x256xf32, #tpu.memory_space<vmem>>, vector<8x256xf32>,
    return
  }
  func.func @transform_0(%arg0: i32, %arg1: i32) -> (i32, i32) {
    %c0_i32 = arith.constant 0 : i32
    return %arg0, %arg1 : i32, i32
  }
  func.func @transform_1(%arg0: i32, %arg1: i32) -> (i32, i32) {
    %c0_i32 = arith.constant 0 : i32
    return %arg0, %arg1 : i32, i32
  }
  func.func @transform_2(%arg0: i32, %arg1: i32) -> (i32, i32) {
    %c0_i32 = arith.constant 0 : i32
    return %arg0, %arg1 : i32, i32
  }
}

</mosaic_0001>

<llo_original>
// kernel: tpu_custom_call.1
$region0: #{tpu_custom_call.1}
  #allocation0 [shape = 'u32[]', space=smem, size = 0x4, offset = 0x4, fixed_abs, tag = 'smem constant byte address 0x4 - core index']
  #allocation1 [shape = 'u32[144,128]{1,0:T(1,128)}', space=vmem, size = 0x12000, scoped, tag = 'internal scratch']
  %s0 = inlined_call_operand.hbm [shape: f32[8,256], index: 0, kind: input, shape index: {}]
  %s1 = inlined_call_operand.hbm [shape: f32[8,256], index: 1, kind: input, shape index: {}]
  %s2 = inlined_call_operand.hbm [shape: f32[8,256], index: 2, kind: output, shape index: {}]
  %s3 = sld [smem:[#allocation0]]
  $region26: #{tpu_custom_call.1} parent=0
    _
  %s5 = ssub.s32 1, %s3
  %s6 = scalar_select 0, %s5, %s3
  $region1: #{tpu_custom_call.1} parent=0
    #allocation2 [shape = 'u8[8192]{0}', space=vmem, size = 0x2000, scoped, tag = 'input window, operand 0, single buffered']
    #allocation3 [shape = 's32[1]{0}', space=sflag, size = 0x4, scoped, tag = 'scoped memory for tpu_custom_call.1']
    #allocation4 [shape = 's32[1]{0}', space=sflag, size = 0x4, scoped, tag = 'scoped memory for tpu_custom_call.1']
    #allocation5 [shape = 'u8[8192]{0}', space=vmem, size = 0x2000, scoped, tag = 'input window, operand 1, single buffered']
    #allocation6 [shape = 's32[1]{0}', space=sflag, size = 0x4, scoped, tag = 'scoped memory for tpu_custom_call.1']
    #allocation7 [shape = 'u8[8192]{0}', space=vmem, size = 0x2000, scoped, tag = 'output window, operand 0, single buffered']
    %7 = vsyncpa [#allocation3], 0
    %8 = vsyncpa [#allocation6], 0
    %9 = vsyncpa [#allocation4], 0
    // Predicated region
    $region2: #{tpu_custom_call.1} parent=1 // pred_check
      _
    $region3: #{tpu_custom_call.1} parent=1 // pred_check_branch
      %11 = sbr.rel (0) target = $region5
    $region4: #{tpu_custom_call.1} parent=1 // pred_region
      %s13 = ssub.s32 256, 256
      %14 = vsyncadd [#allocation3], %s13
      %s16 = sshll.u32 [#allocation2], 4
      %s17 = int_to_ptr.vmem [resolvable:$true] %s16
      %19 = dma.hbm_to_vmem [thread:$0]  %s0, 256, %s17, [#allocation3]
    $region5: #{tpu_custom_call.1} parent=1 // pred_fallthru
      _
    // Predicated region
    $region6: #{tpu_custom_call.1} parent=1 // pred_check
      _
    $region7: #{tpu_custom_call.1} parent=1 // pred_check_branch
      %21 = sbr.rel (0) target = $region9
    $region8: #{tpu_custom_call.1} parent=1 // pred_region
      %s23 = ssub.s32 256, 256
      %24 = vsyncadd [#allocation6], %s23
      %s26 = sshll.u32 [#allocation5], 4
      %s27 = int_to_ptr.vmem [resolvable:$true] %s26
      %29 = dma.hbm_to_vmem [thread:$0]  %s1, 256, %s27, [#allocation6]
    $region9: #{tpu_custom_call.1} parent=1 // pred_fallthru
      _
    // Predicated region
    $region10: #{tpu_custom_call.1} parent=1 // pred_check
      _
    $region11: #{tpu_custom_call.1} parent=1 // pred_check_branch
      %31 = sbr.rel (0) target = $region13
    $region12: #{tpu_custom_call.1} parent=1 // pred_region
      %32 = dma.done [#allocation3], 256
    $region13: #{tpu_custom_call.1} parent=1 // pred_fallthru
      _
    // Predicated region
    $region14: #{tpu_custom_call.1} parent=1 // pred_check
      _
    $region15: #{tpu_custom_call.1} parent=1 // pred_check_branch
      %34 = sbr.rel (0) target = $region17
    $region16: #{tpu_custom_call.1} parent=1 // pred_region
      %35 = dma.done [#allocation6], 256
    $region17: #{tpu_custom_call.1} parent=1 // pred_fallthru
      _
    %v36 = vld [vmem:[#allocation2] sm:$0xff]
    %v37 = vld [vmem:[#allocation2 + $0x8] sm:$0xff]
    %v38 = vld [vmem:[#allocation5] sm:$0xff]
    %v39 = vld [vmem:[#allocation5 + $0x8] sm:$0xff]
    %v40 = vmul.f32 %v36, %v38
    %v41 = vmul.f32 %v37, %v39
    %v42 = vadd.f32 %v40, 1.0
    %v43 = vadd.f32 %v41, 1.0
    %44 = vst [vmem:[#allocation7] sm:$0xff] %v42
    %45 = vst [vmem:[#allocation7 + $0x8] sm:$0xff] %v43
    // Predicated region
    $region18: #{tpu_custom_call.1} parent=1 // pred_check
      _
    $region19: #{tpu_custom_call.1} parent=1 // pred_check_branch
      %47 = sbr.rel (0) target = $region21
    $region20: #{tpu_custom_call.1} parent=1 // pred_region
      %s49 = ssub.s32 256, 256
      %50 = vsyncadd [#allocation4], %s49
      %s52 = sshll.u32 [#allocation7], 4
      %s53 = int_to_ptr.vmem [resolvable:$true] %s52
      %55 = dma.vmem_to_hbm [thread:$0]  %s53, 256, %s2, [#allocation4]
    $region21: #{tpu_custom_call.1} parent=1 // pred_fallthru
      _
    // Predicated region
    $region22: #{tpu_custom_call.1} parent=1 // pred_check
      _
    $region23: #{tpu_custom_call.1} parent=1 // pred_check_branch
      %57 = sbr.rel (0) target = $region25
    $region24: #{tpu_custom_call.1} parent=1 // pred_region
      %58 = dma.done [#allocation4], 256
    $region25: #{tpu_custom_call.1} parent=1 // pred_fallthru
      _
    %59 = vsyncpa [#allocation3], 1
    %60 = vsyncpa [#allocation6], 1
    %61 = vsyncpa [#allocation4], 1

</llo_original>
